<compile_context>
chip_gen: v6e
topology: v6e:2x2x1
jax: 0.10.0
libtpu: 0.0.40
codegen_flags: <defaults>
</compile_context>

<pallas_src>
import functools

import jax
import jax.numpy as jnp
from jax.experimental import pallas as pl
from jax.experimental.pallas import tpu as pltpu


# ----------------------------------------------------------------------------
# Pallas kernels
# ----------------------------------------------------------------------------
def _swiglu_fused_kernel(x_ref, o_ref, *, d_model):
    """x_ref: (TR, 2*d_model) block; o_ref: (TR, d_model) block.

    Only used when d_model % 128 == 0, so the lane slices below are free
    (no XLU relayout) and the output store is an unmasked lane-dense vst.
    """
    a = x_ref[:, pl.ds(0, d_model)].astype(jnp.float32)
    b = x_ref[:, pl.ds(d_model, d_model)].astype(jnp.float32)
    # f32 vector math (safe on v5e, no bf16 VPU/EUP there); the logistic goes
    # to the EUP, which has slack in this mem-bound kernel.  Garbage rows in a
    # padded last block may produce Inf/NaN here, but the masked writeback of
    # the partial output block discards them.
    o_ref[...] = (a * (b * jax.lax.logistic(b))).astype(o_ref.dtype)


def _swiglu_split_kernel(a_ref, b_ref, o_ref):
    """Fallback when d_model % 128 != 0: a/b are pre-split in the wrapper so
    every block's last dim equals the full array dim (legal BlockSpec, no
    unaligned in-kernel lane slice)."""
    a = a_ref[...].astype(jnp.float32)
    b = b_ref[...].astype(jnp.float32)
    o_ref[...] = (a * (b * jax.lax.logistic(b))).astype(o_ref.dtype)


# ----------------------------------------------------------------------------
# Wrapper
# ----------------------------------------------------------------------------
def _vmem_capacity_bytes():
    try:
        return int(pltpu.get_tpu_info().vmem_capacity_bytes)
    except Exception:
        return 64 << 20  # conservative default (v7x per-TensorCore VMEM)


def swiglu(x, d_model, *, block_rows=None):
    assert x.shape[-1] == 2 * d_model, (x.shape, d_model)
    lead = x.shape[:-1]
    rows = 1
    for s in lead:
        rows *= int(s)
    rows = max(rows, 1)
    x2 = x.reshape(rows, 2 * d_model)

    itemsize = jnp.dtype(x.dtype).itemsize
    # Dtype-dependent sublane multiple: 8 (f32), 16 (bf16), 32 (int8/fp8).
    sublane = max(8, 32 // itemsize)
    # Double-buffered pipelined working set per row: input (2*D) + output (D).
    ws_bytes_per_row = 2 * 3 * d_model * itemsize

    vmem_cap = _vmem_capacity_bytes()
    vmem_ceiling = int(0.85 * vmem_cap)
    headroom = 8 << 20  # compiler scratch + un-budgeted f32 intermediates

    # Per-generation working-set budget (budget is the *double-buffered* set):
    #   v7x  (64 MiB VMEM/TC, ~3.2 TB/s HBM): ~28 MiB -> ~14 MiB HBM per step
    #   v5e/v6e (128 MiB VMEM):               ~16 MiB -> ~8 MiB HBM per step
    budget = (28 << 20) if vmem_cap <= (64 << 20) else (16 << 20)
    budget = max(min(budget, vmem_ceiling - headroom), 1 << 20)

    auto_rows = block_rows is None
    if auto_rows:
        block_rows = budget // max(ws_bytes_per_row, 1)
    # Clamp so the (already double-buffered) tile + headroom always fits the
    # physical VMEM of the current generation (v7x: 64 MiB/TC).
    max_rows_by_vmem = max(
        (vmem_ceiling - headroom) // max(ws_bytes_per_row, 1), 1)
    block_rows = int(min(block_rows, max_rows_by_vmem, rows))
    block_rows = max(block_rows, min(sublane, rows))
    if block_rows < rows:
        block_rows = max(sublane, block_rows - block_rows % sublane)
    # Guarantee >= 2 grid steps whenever possible so both v7x TensorCores
    # get work under dimension_semantics=("parallel",).
    if auto_rows and block_rows >= rows and rows >= 2 * sublane:
        half = -(-rows // 2)
        half = -(-half // sublane) * sublane
        if half < rows:
            block_rows = half

    grid = (pl.cdiv(rows, block_rows),)

    # tile_ws_bytes already includes double buffering (factor of 2 above) --
    # do NOT multiply by 2 again when deriving the VMEM limit.
    tile_ws_bytes = block_rows * ws_bytes_per_row
    vmem_limit = int(min(max(tile_ws_bytes + headroom, 16 << 20), vmem_ceiling))

    compiler_params = pltpu.CompilerParams(
        dimension_semantics=("parallel",),  # lets v7x's 2 TCs share the rows
        vmem_limit_bytes=vmem_limit,
    )
    out_shape = jax.ShapeDtypeStruct((rows, d_model), x.dtype)
    out_spec = pl.BlockSpec((block_rows, d_model), lambda i: (i, 0))

    if d_model % 128 == 0:
        # Lane-aligned: single fused load of (TR, 2*d_model), split in-kernel.
        kernel = functools.partial(_swiglu_fused_kernel, d_model=d_model)
        out2 = pl.pallas_call(
            kernel,
            out_shape=out_shape,
            grid_spec=pltpu.PrefetchScalarGridSpec(
                num_scalar_prefetch=0,
                grid=grid,
                in_specs=[pl.BlockSpec((block_rows, 2 * d_model),
                                       lambda i: (i, 0))],
                out_specs=out_spec,
            ),
            compiler_params=compiler_params,
        )(x2)
    else:
        # Unaligned d_model: split a/b in the wrapper so block last dims equal
        # the full array dims (legal and avoids an unaligned in-kernel slice).
        a = x2[:, :d_model]
        b = x2[:, d_model:]
        half_spec = pl.BlockSpec((block_rows, d_model), lambda i: (i, 0))
        out2 = pl.pallas_call(
            _swiglu_split_kernel,
            out_shape=out_shape,
            grid_spec=pltpu.PrefetchScalarGridSpec(
                num_scalar_prefetch=0,
                grid=grid,
                in_specs=[half_spec, half_spec],
                out_specs=out_spec,
            ),
            compiler_params=compiler_params,
        )(a, b)

    return out2.reshape(lead + (d_model,))


# ----------------------------------------------------------------------------
# Pure-JAX reference (faithful to the torch module) for sanity checking
# ----------------------------------------------------------------------------
def swiglu_ref(x, d_model):
    a = x[..., :d_model]
    b = x[..., d_model:]
    return a * (b * jax.nn.sigmoid(b))


# ----------------------------------------------------------------------------
# Main
# ----------------------------------------------------------------------------
if __name__ == "__main__":
    # Small but lane-aligned shapes: d_model is a multiple of 128 (lane-dense
    # stores) and B*S is a multiple of the sublane count.
    B, S, D_MODEL = 2, 8, 128
    key = jax.random.PRNGKey(0)
    x = jax.random.normal(key, (B, S, 2 * D_MODEL), dtype=jnp.float32)

    out = jax.block_until_ready(swiglu(x, D_MODEL))
    assert out.shape == (B, S, D_MODEL)

    ref = jax.block_until_ready(swiglu_ref(x, D_MODEL))
    if not jnp.allclose(out, ref, atol=1e-4, rtol=1e-4):
        raise AssertionError("Pallas Swiglu output mismatch vs reference")

    print("KERNEL_OK")
</pallas_src>

<mosaic_0001>
module attributes {stable_mosaic.version = 11 : i64} {
  func.func @_swiglu_fused_kernel(%arg0: i32, %arg1: memref<8x256xf32, #tpu.memory_space<vmem>>, %arg2: memref<8x128xf32, #tpu.memory_space<vmem>>) attributes {dimension_semantics = [#tpu.dimension_semantics<parallel>], iteration_bounds = array<i64: 2>, scalar_prefetch = 0 : i64, scratch_operands = 0 : i64, tpu.core_type = #tpu.core_type<tc>, window_params = [{transform_indices = @transform_0, window_bounds = array<i64: 8, 256>}, {transform_indices = @transform_1, window_bounds = array<i64: 8, 128>}]} {
    %c0 = arith.constant 0 : index
    %c0_0 = arith.constant 0 : index
    %0 = vector.load %arg1[%c0, %c0_0] : memref<8x256xf32, #tpu.memory_space<vmem>>, vector<8x128xf32>
    %c0_1 = arith.constant 0 : index
    %c128 = arith.constant 128 : index
    %1 = vector.load %arg1[%c0_1, %c128] : memref<8x256xf32, #tpu.memory_space<vmem>>, vector<8x128xf32>
    %2 = arith.negf %1 : vector<8x128xf32>
    %3 = math.exp %2 : vector<8x128xf32>
    %cst = arith.constant 1.000000e+00 : f32
    %4 = vector.broadcast %cst : f32 to vector<8x128xf32>
    %5 = arith.addf %4, %3 : vector<8x128xf32>
    %6 = arith.divf %4, %5 : vector<8x128xf32>
    %7 = arith.mulf %1, %6 : vector<8x128xf32>
    %8 = arith.mulf %0, %7 : vector<8x128xf32>
    %c0_2 = arith.constant 0 : index
    %c0_3 = arith.constant 0 : index
    %9 = vector.load %arg2[%c0_2, %c0_3] : memref<8x128xf32, #tpu.memory_space<vmem>>, vector<8x128xf32>
    tpu.vector_store %arg2[%c0_2, %c0_3], %8 {strides = array<i32>} : memref<8x128xf32, #tpu.memory_space<vmem>>, vector<8x128xf32>,
    return
  }
  func.func @transform_0(%arg0: i32) -> (i32, i32) {
    %c0_i32 = arith.constant 0 : i32
    %c0_i32_0 = arith.constant 0 : i32
    return %arg0, %c0_i32 : i32, i32
  }
  func.func @transform_1(%arg0: i32) -> (i32, i32) {
    %c0_i32 = arith.constant 0 : i32
    %c0_i32_0 = arith.constant 0 : i32
    return %arg0, %c0_i32 : i32, i32
  }
}

</mosaic_0001>

<llo_original>
// kernel: tpu_custom_call.1
$region0: #{tpu_custom_call.1}
  #allocation0 [shape = 'u32[]', space=smem, size = 0x4, offset = 0x4, fixed_abs, tag = 'smem constant byte address 0x4 - core index']
  #allocation1 [shape = 'u32[144,128]{1,0:T(1,128)}', space=vmem, size = 0x12000, scoped, tag = 'internal scratch']
  %s0 = inlined_call_operand.hbm [shape: f32[16,256], index: 0, kind: input, shape index: {}]
  %s1 = inlined_call_operand.hbm [shape: f32[16,128], index: 1, kind: output, shape index: {}]
  %s2 = sld [smem:[#allocation0]]
  $region41: #{tpu_custom_call.1} parent=0
    _
  %s4 = ssub.s32 1, %s2
  %s5 = scalar_select 0, %s4, %s2
  $region1: #{tpu_custom_call.1} parent=0
    #allocation2 [shape = 'u8[16384]{0}', space=vmem, size = 0x4000, scoped, tag = 'input window, operand 0']
    #allocation3 [shape = 's32[2]{0}', space=sflag, size = 0x8, scoped, tag = 'scoped memory for tpu_custom_call.1']
    #allocation4 [shape = 's32[2]{0}', space=sflag, size = 0x8, scoped, tag = 'scoped memory for tpu_custom_call.1']
    #allocation5 [shape = 'u8[8192]{0}', space=vmem, size = 0x2000, scoped, tag = 'output window, operand 0']
    %6 = vsyncpa [#allocation3], 0
    %s7 = scalar_lea.sflag [#allocation3], 1
    %8 = vsyncpa %s7, 0
    %9 = vsyncpa [#allocation4], 0
    %s10 = scalar_lea.sflag [#allocation4], 1
    %11 = vsyncpa %s10, 0
    loop: start=0, step=1, limit=4
    $region2: #{tpu_custom_call.1} parent=1 // loop_pre_header
      _
    $region3: #{tpu_custom_call.1} parent=1 // loop_header
      %s13 = sphi 0, %s17
      %p14 = scmp.ge.s32.totalorder %s13, 4
      %s23 = sphi 0, %s25
      %s26 = sphi 0, %s23
      %s27 = sphi 0, %s26
      %s43 = sphi 0, %s27
      %s49 = sphi 0, %s51
      %s52 = sphi 0, %s49
      %s53 = sphi 0, %s52
      %s69 = sphi 0, %s53
    $region4: #{tpu_custom_call.1} parent=1 // loop_header_branch
      %16 = sbr.rel (%p14) target = $region8
    $region5: #{tpu_custom_call.1} parent=1 // loop_body
      %s18 = ssub.s32 %s13, 1
      %s19 = ssub.s32 %s13, 2
      %s20 = sadd.s32 %s13, 1
      %s21 = ssub.s32 %s13, %s20
      %p22 = scmp.eq.s32.totalorder %s21, 0
      %s24 = sadd.s32 %s23, 1
      %s25 = scalar_select %p22, %s23, %s24
      %p28 = pneg %p22
      %p29 = scmp.eq.s32.totalorder %s13, 1
      %p30 = por %p28, %p29
      %p31 = scmp.ne.s32.totalorder %s23, %s26
      %p32 = scmp.eq.s32.totalorder %s13, 0
      %p33 = por %p31, %p32
      %p34 = scmp.ne.s32.totalorder %s23, %s26
      %p35 = scmp.eq.s32.totalorder %s18, 1
      %p36 = por %p34, %p35
      %p37 = scmp.ne.s32.totalorder %s26, %s27
      %p38 = scmp.eq.s32.totalorder %s18, 0
      %p39 = por %p37, %p38
      %p40 = scmp.ne.s32.totalorder %s26, %s27
      %p41 = scmp.eq.s32.totalorder %s19, 1
      %p42 = por %p40, %p41
      %p44 = scmp.ne.s32.totalorder %s27, %s43
      %p45 = scmp.eq.s32.totalorder %s19, 0
      %p46 = por %p44, %p45
      %s47 = ssub.s32 %s13, %s20
      %p48 = scmp.eq.s32.totalorder %s47, 0
      %s50 = sadd.s32 %s49, 1
      %s51 = scalar_select %p48, %s49, %s50
      %p54 = pneg %p48
      %p55 = scmp.eq.s32.totalorder %s13, 1
      %p56 = por %p54, %p55
      %p57 = scmp.ne.s32.totalorder %s49, %s52
      %p58 = scmp.eq.s32.totalorder %s13, 0
      %p59 = por %p57, %p58
      %p60 = scmp.ne.s32.totalorder %s49, %s52
      %p61 = scmp.eq.s32.totalorder %s18, 1
      %p62 = por %p60, %p61
      %p63 = scmp.ne.s32.totalorder %s52, %s53
      %p64 = scmp.eq.s32.totalorder %s18, 0
      %p65 = por %p63, %p64
      %p66 = scmp.ne.s32.totalorder %s52, %s53
      %p67 = scmp.eq.s32.totalorder %s19, 1
      %p68 = por %p66, %p67
      %p70 = scmp.ne.s32.totalorder %s53, %s69
      %p71 = scmp.eq.s32.totalorder %s19, 0
      %p72 = por %p70, %p71
      %p73 = scmp.le.s32.totalorder 1, %s13
      %p74 = scmp.lt.s32.totalorder %s13, 3
      %p75 = pnand %p73, %p74
      %p76 = pneg %p75
      // Predicated region
      $region9: #{tpu_custom_call.1} parent=5 // pred_check
        _
      $region10: #{tpu_custom_call.1} parent=5 // pred_check_branch
        %78 = sbr.rel (%p75) target = $region12
      $region11: #{tpu_custom_call.1} parent=5 // pred_region
        %s79 = ssub.s32 %s13, 1
      $region12: #{tpu_custom_call.1} parent=5 // pred_fallthru
        _
      %p80 = scmp.lt.s32.totalorder %s13, 2
      // Predicated region
      $region13: #{tpu_custom_call.1} parent=5 // pred_check
        %p81 = pneg %p80
      $region14: #{tpu_custom_call.1} parent=5 // pred_check_branch
        %83 = sbr.rel (%p81) target = $region16
      $region15: #{tpu_custom_call.1} parent=5 // pred_region
        // Predicated region
        $region17: #{tpu_custom_call.1} parent=15 // pred_check
          %p84 = pneg %p33
        $region18: #{tpu_custom_call.1} parent=15 // pred_check_branch
          %86 = sbr.rel (%p84) target = $region20
        $region19: #{tpu_custom_call.1} parent=15 // pred_region
          %s87 = sand.u32 %s23, 1
          %s88 = scalar_lea.sflag [#allocation3], %s87
          %s89 = sand.u32 %s23, 1
          %s90 = smul.addr %s89, 16
          %s91 = scalar_lea.vmem [#allocation2], %s90
          %s93 = ssub.s32 256, 256
          %94 = vsyncadd %s88, %s93
          %s95 = smul.addr %s13, 2
          %s96 = smul.addr %s95, 128
          %s97 = scalar_lea.hbm %s0, %s96
          %s99 = sshll.u32 %s91, 4
          %s100 = int_to_ptr.vmem [resolvable:$true] %s99
          %102 = dma.hbm_to_vmem [thread:$0]  %s97, 256, %s100, %s88
        $region20: #{tpu_custom_call.1} parent=15 // pred_fallthru
          _
      $region16: #{tpu_custom_call.1} parent=5 // pred_fallthru
        _
      %p103 = scmp.le.s32.totalorder 1, %s13
      %p104 = scmp.lt.s32.totalorder %s13, 3
      %p105 = pnand %p103, %p104
      %p106 = pneg %p105
      // Predicated region
      $region21: #{tpu_custom_call.1} parent=5 // pred_check
        _
      $region22: #{tpu_custom_call.1} parent=5 // pred_check_branch
        %108 = sbr.rel (%p105) target = $region24
      $region23: #{tpu_custom_call.1} parent=5 // pred_region
        %s109 = ssub.s32 %s13, 1
        %s110 = sand.u32 %s26, 1
        %s111 = scalar_lea.sflag [#allocation3], %s110
        %s112 = sand.u32 %s26, 1
        %s113 = smul.addr %s112, 16
        %s114 = scalar_lea.vmem [#allocation2], %s113
        // Predicated region
        $region25: #{tpu_custom_call.1} parent=23 // pred_check
          %p115 = pneg %p39
        $region26: #{tpu_custom_call.1} parent=23 // pred_check_branch
          %117 = sbr.rel (%p115) target = $region28
        $region27: #{tpu_custom_call.1} parent=23 // pred_region
          %118 = dma.done %s111, 256
        $region28: #{tpu_custom_call.1} parent=23 // pred_fallthru
          _
        %s119 = sand.u32 %s26, 1
        %s120 = scalar_lea.sflag [#allocation3], %s119
        %s121 = sand.u32 %s26, 1
        %s122 = smul.addr %s121, 16
        %s123 = scalar_lea.vmem [#allocation2], %s122
        %p124 = pneg %p39
        %p125 = pneg %p36
        %p126 = pneg %p65
        %p127 = pneg %p62
        %s128 = sand.u32 %s52, 1
        %s129 = scalar_lea.sflag [#allocation4], %s128
        %s130 = sand.u32 %s52, 1
        %s131 = smul.addr %s130, 8
        %s132 = scalar_lea.vmem [#allocation5], %s131
        %v133 = vld [vmem:[%s114] sm:$0xff]
        %v134 = vld [vmem:[%s114 + $0x8] sm:$0xff]
        %v135 = vxor.u32 %v134, 2147483648
        %v136 = vmul.f32 %v135, 1.442695
        %v137 = vpow.pop %v136
        %v138 = vadd.f32 %v137, 1.0
        %v139 = vrcp.pop %v138
        %v140 = vmul.f32 1.0, %v139
        %v141 = vmul.f32 %v134, %v140
        %v142 = vmul.f32 %v133, %v141
        %143 = vst [vmem:[%s132] sm:$0xff] %v142
        %s144 = sand.u32 %s52, 1
        %s145 = scalar_lea.sflag [#allocation4], %s144
        %s146 = sand.u32 %s52, 1
        %s147 = smul.addr %s146, 8
        %s148 = scalar_lea.vmem [#allocation5], %s147
        // Predicated region
        $region29: #{tpu_custom_call.1} parent=23 // pred_check
          %p149 = pneg %p62
        $region30: #{tpu_custom_call.1} parent=23 // pred_check_branch
          %151 = sbr.rel (%p149) target = $region32
        $region31: #{tpu_custom_call.1} parent=23 // pred_region
          %s153 = ssub.s32 128, 128
          %154 = vsyncadd %s145, %s153
          %s155 = smul.addr %s18, 128
          %s156 = scalar_lea.hbm %s1, %s155
          %s158 = sshll.u32 %s148, 4
          %s159 = int_to_ptr.vmem [resolvable:$true] %s158
          %161 = dma.vmem_to_hbm [thread:$0]  %s159, 128, %s156, %s145
        $region32: #{tpu_custom_call.1} parent=23 // pred_fallthru
          _
      $region24: #{tpu_custom_call.1} parent=5 // pred_fallthru
        _
      %p162 = scmp.le.s32.totalorder 2, %s13
      // Predicated region
      $region33: #{tpu_custom_call.1} parent=5 // pred_check
        %p163 = pneg %p162
      $region34: #{tpu_custom_call.1} parent=5 // pred_check_branch
        %165 = sbr.rel (%p163) target = $region36
      $region35: #{tpu_custom_call.1} parent=5 // pred_region
        %s166 = ssub.s32 %s13, 2
        // Predicated region
        $region37: #{tpu_custom_call.1} parent=35 // pred_check
          %p167 = pneg %p68
        $region38: #{tpu_custom_call.1} parent=35 // pred_check_branch
          %169 = sbr.rel (%p167) target = $region40
        $region39: #{tpu_custom_call.1} parent=35 // pred_region
          %s170 = sand.u32 %s53, 1
          %s171 = scalar_lea.sflag [#allocation4], %s170
          %s172 = sand.u32 %s53, 1
          %s173 = smul.addr %s172, 8
          %s174 = scalar_lea.vmem [#allocation5], %s173
          %175 = dma.done %s171, 128
        $region40: #{tpu_custom_call.1} parent=35 // pred_fallthru
          _
      $region36: #{tpu_custom_call.1} parent=5 // pred_fallthru
        _
    $region6: #{tpu_custom_call.1} parent=1 // loop_footer
      %s17 = sadd.s32 1, %s13
    $region7: #{tpu_custom_call.1} parent=1 // loop_footer_branch
      %12 = sbr.rel target = $region3
    $region8: #{tpu_custom_call.1} parent=1 // loop_exit
      _
    %176 = vsyncpa [#allocation3], 1
    %s177 = scalar_lea.sflag [#allocation3], 1
    %178 = vsyncpa %s177, 1
    %179 = vsyncpa [#allocation4], 1
    %s180 = scalar_lea.sflag [#allocation4], 1
    %181 = vsyncpa %s180, 1

</llo_original>
